<compile_context>
chip_gen: v7x
topology: tpu7x:2x2x1
jax: 0.10.0
libtpu: 0.0.40
codegen_flags: <defaults>
</compile_context>

<pallas_src>
import functools

import jax
import jax.numpy as jnp
from jax import lax
from jax.experimental import pallas as pl
from jax.experimental.pallas import tpu as pltpu


# --------------------------------------------------------------------------
# Stage 1: meta_net MLP + ctx shift (tiny, compute)
# --------------------------------------------------------------------------
def meta_net_kernel(x_ref, ctx_ref, w1_ref, b1_ref, w2_ref, b2_ref,
                    ctx_shift_ref, imgf_ref, *, n_ctx):
    """grid=(B,).
    x_ref         : (n_ctx, embed_dim)   im_features for batch row b
    ctx_ref       : (n_ctx, ctx_dim)     learned context (constant)
    w1/b1/w2/b2   : meta_net params (constant)
    ctx_shift_ref : (n_ctx, ctx_dim)     ctx + meta_net bias, prompts dtype
    imgf_ref      : (1, ctx_dim)         meta_net output of last ctx slot
    """
    x = x_ref[...]                                               # (n_ctx, E)
    h = jnp.dot(x, w1_ref[...], preferred_element_type=jnp.float32)
    h = jnp.maximum(h + b1_ref[...], 0.0)
    bias = jnp.dot(h, w2_ref[...], preferred_element_type=jnp.float32)
    bias = bias + b2_ref[...]                                    # (n_ctx, D)
    ctx_shift_ref[...] = (ctx_ref[...].astype(jnp.float32)
                          + bias).astype(ctx_shift_ref.dtype)
    imgf_ref[...] = bias[n_ctx - 1:, :].astype(imgf_ref.dtype)


# --------------------------------------------------------------------------
# Stage 2: [prefix ; ctx_shifted ; suffix] assembly (HBM-write-bound)
# --------------------------------------------------------------------------
def assemble_kernel(ctxs_ref, prefix_ref, suffix_ref, prompts_ref,
                    *, lp, n_ctx, c_tile):
    """grid=(num_c_tiles, B)  --  class tile OUTER, batch INNER.
    ctxs_ref    : (n_ctx, ctx_dim)        ctx_shifted for batch b (tiny)
    prefix_ref  : (c_tile, lp, ctx_dim)   streamed per class tile
    suffix_ref  : (c_tile, ls, ctx_dim)   streamed per class tile
    prompts_ref : (c_tile, L, ctx_dim)    output block for (b, class tile ct)
    """
    prompts_ref[:, 0:lp, :] = prefix_ref[...].astype(prompts_ref.dtype)
    prompts_ref[:, lp + n_ctx:, :] = suffix_ref[...].astype(prompts_ref.dtype)

    # ctx rows: already in output dtype (pre-cast in stage 1); write per
    # class so we never materialize a (c_tile, n_ctx, D) broadcast temp.
    # NOTE: offsets lp / lp+n_ctx are not sublane-aligned by construction of
    # the prompt layout (semantics-fixed); c_tile itself is chosen as a
    # multiple of 8 where possible to keep stores sublane-dense.
    ctx_s = ctxs_ref[...]                                        # (n_ctx, D)
    if c_tile <= 8:
        for c in range(c_tile):            # static unroll, LLO-visible
            prompts_ref[c, lp:lp + n_ctx, :] = ctx_s
    else:
        def _write_ctx(c, carry):
            prompts_ref[c, lp:lp + n_ctx, :] = ctx_s
            return carry
        lax.fori_loop(0, c_tile, _write_ctx, 0)


# --------------------------------------------------------------------------
# Sizing helpers
# --------------------------------------------------------------------------
def _vmem_limit_bytes():
    """Explicit scoped-VMEM limit (default is only 16 MiB on v5e, 32 MiB on
    v6e/v7x).  Budget ~3/4 of physical VMEM, capped at 100 MiB."""
    cap = 64 * 1024 * 1024                       # conservative fallback (v7x)
    try:
        cap = int(pltpu.get_tpu_info().vmem_capacity_bytes)
    except Exception:
        pass
    return int(max(32 * 1024 * 1024, min(cap * 3 // 4, 100 * 1024 * 1024)))


def _pick_c_tile(n_cls, seq_len, lp, ls, ctx_dim, itemsize, vmem_limit_bytes):
    """Largest class tile whose double-buffered blocks (output + streamed
    prefix + suffix) fit ~half the scoped VMEM limit.  No divisor-of-n_cls
    requirement (grid uses pl.cdiv; the partial last tile is masked)."""
    budget = vmem_limit_bytes // 2
    per_class = 2 * (seq_len + lp + ls) * ctx_dim * itemsize   # 2x: dbl buffer
    c = max(1, budget // per_class)
    c = int(min(c, n_cls))
    if c >= 8:
        c = (c // 8) * 8          # sublane-aligned class tiles
    return max(1, c)


# --------------------------------------------------------------------------
# Wrapper
# --------------------------------------------------------------------------
def cocoop_prompt_learner_forward(im_features, ctx, w1, b1, w2, b2,
                                  token_prefix, token_suffix,
                                  ctx_only=False, c_tile=None):
    B, n_ctx, embed_dim = im_features.shape
    ctx_dim = ctx.shape[-1]
    hidden = w1.shape[1]
    n_cls, lp, _ = token_prefix.shape
    ls = token_suffix.shape[1]
    L = lp + n_ctx + ls
    dt = im_features.dtype
    itemsize = jnp.dtype(dt).itemsize

    vmem_limit = _vmem_limit_bytes()

    b1_2d = b1.reshape(1, hidden)
    b2_2d = b2.reshape(1, ctx_dim)

    # ---------------- Stage 1: meta_net + ctx shift ------------------------
    cost1 = pl.CostEstimate(
        flops=2 * B * n_ctx * (embed_dim * hidden + hidden * ctx_dim),
        transcendentals=0,
        bytes_accessed=int(im_features.nbytes + ctx.nbytes + w1.nbytes
                           + b1.nbytes + w2.nbytes + b2.nbytes
                           + B * n_ctx * ctx_dim * itemsize
                           + B * ctx_dim * itemsize))

    ctx_shifted, imgf = pl.pallas_call(
        functools.partial(meta_net_kernel, n_ctx=n_ctx),
        out_shape=(jax.ShapeDtypeStruct((B, n_ctx, ctx_dim), dt),
                   jax.ShapeDtypeStruct((B, 1, ctx_dim), dt)),
        grid=(B,),
        in_specs=[
            pl.BlockSpec((None, n_ctx, embed_dim), lambda b: (b, 0, 0)),
            pl.BlockSpec((n_ctx, ctx_dim), lambda b: (0, 0)),
            pl.BlockSpec((embed_dim, hidden), lambda b: (0, 0)),
            pl.BlockSpec((1, hidden), lambda b: (0, 0)),
            pl.BlockSpec((hidden, ctx_dim), lambda b: (0, 0)),
            pl.BlockSpec((1, ctx_dim), lambda b: (0, 0)),
        ],
        out_specs=(pl.BlockSpec((None, n_ctx, ctx_dim), lambda b: (b, 0, 0)),
                   pl.BlockSpec((None, 1, ctx_dim), lambda b: (b, 0, 0))),
        compiler_params=pltpu.CompilerParams(
            dimension_semantics=("parallel",),
            vmem_limit_bytes=vmem_limit),
        cost_estimate=cost1,
    )(im_features, ctx, w1, b1_2d, w2, b2_2d)

    image_features = imgf.reshape(B, ctx_dim)
    if ctx_only:
        return ctx_shifted, image_features

    # ---------------- Stage 2: prompt assembly -----------------------------
    if c_tile is None:
        c_tile = _pick_c_tile(n_cls, L, lp, ls, ctx_dim, itemsize, vmem_limit)
    num_c_tiles = int(pl.cdiv(n_cls, c_tile))

    cost2 = pl.CostEstimate(
        flops=0, transcendentals=0,
        bytes_accessed=int(
            token_prefix.nbytes + token_suffix.nbytes          # read once (ct outer)
            + B * num_c_tiles * n_ctx * ctx_dim * itemsize     # ctx_shifted re-reads
            + B * n_cls * L * ctx_dim * itemsize))             # prompts out

    prompts = pl.pallas_call(
        functools.partial(assemble_kernel, lp=lp, n_ctx=n_ctx, c_tile=c_tile),
        out_shape=jax.ShapeDtypeStruct((B, n_cls, L, ctx_dim), dt),
        grid=(num_c_tiles, B),                 # class tile OUTER, batch INNER
        in_specs=[
            # ctx_shifted for batch b (tiny, changes every inner step)
            pl.BlockSpec((None, n_ctx, ctx_dim), lambda ct, b: (b, 0, 0)),
            # prefix / suffix streamed per class tile; constant across b, so
            # each tile is DMA'd from HBM exactly once.
            pl.BlockSpec((c_tile, lp, ctx_dim), lambda ct, b: (ct, 0, 0)),
            pl.BlockSpec((c_tile, ls, ctx_dim), lambda ct, b: (ct, 0, 0)),
        ],
        out_specs=pl.BlockSpec((None, c_tile, L, ctx_dim),
                               lambda ct, b: (b, ct, 0, 0)),
        compiler_params=pltpu.CompilerParams(
            dimension_semantics=("parallel", "parallel"),
            vmem_limit_bytes=vmem_limit),
        cost_estimate=cost2,
    )(ctx_shifted, token_prefix, token_suffix)

    return prompts, image_features


# --------------------------------------------------------------------------
# Pure-JAX reference
# --------------------------------------------------------------------------
def ref_forward(im_features, ctx, w1, b1, w2, b2, token_prefix, token_suffix):
    B, n_ctx, _ = im_features.shape
    n_cls = token_prefix.shape[0]
    x = im_features.reshape(B * n_ctx, -1)
    h = jnp.maximum(x @ w1 + b1[None, :], 0.0)
    bias = (h @ w2 + b2[None, :]).reshape(B, n_ctx, -1)
    ctx_shifted = ctx[None, :, :] + bias
    image_features = bias[:, -1, :]
    ctx_exp = jnp.broadcast_to(ctx_shifted[:, None, :, :],
                               (B, n_cls) + ctx_shifted.shape[1:])
    pre = jnp.broadcast_to(token_prefix[None], (B,) + token_prefix.shape)
    suf = jnp.broadcast_to(token_suffix[None], (B,) + token_suffix.shape)
    prompts = jnp.concatenate([pre, ctx_exp, suf], axis=2)
    return prompts, image_features, ctx_shifted


if __name__ == "__main__":
    # Synthetic, deterministic parameters (no checkpoint / tokenizer load).
    # TODO(synk): CLIP tokenization + token_embedding buffer init has no
    # Pallas equivalent; token_prefix/token_suffix/ctx are synthesized here.
    B = 2
    N_CTX = 4                  # len("a photo of a")
    EMBED_DIM = 128            # CLIP text_projection.shape[1] (scaled down)
    CTX_DIM = 128              # CLIP ln_final width (scaled down)
    HIDDEN = EMBED_DIM // 16   # meta_net bottleneck
    N_CLS = 3
    L_PREFIX = 1 + 5           # token_prefix = embedding[:, :1+5, :]
    SEQ_LEN = 16               # synthetic tokenized length (real CLIP uses 77)
    L_SUFFIX = SEQ_LEN - (1 + 5 + N_CTX)

    key = jax.random.PRNGKey(0)
    ks = jax.random.split(key, 8)
    im_features = jax.random.normal(ks[0], (B, N_CTX, EMBED_DIM), jnp.float32)
    ctx = jax.random.normal(ks[1], (N_CTX, CTX_DIM), jnp.float32) * 0.02
    w1 = jax.random.normal(ks[2], (EMBED_DIM, HIDDEN), jnp.float32) * 0.05
    b1 = jax.random.normal(ks[3], (HIDDEN,), jnp.float32) * 0.05
    w2 = jax.random.normal(ks[4], (HIDDEN, CTX_DIM), jnp.float32) * 0.05
    b2 = jax.random.normal(ks[5], (CTX_DIM,), jnp.float32) * 0.05
    token_prefix = jax.random.normal(ks[6], (N_CLS, L_PREFIX, CTX_DIM),
                                     jnp.float32)
    token_suffix = jax.random.normal(ks[7], (N_CLS, L_SUFFIX, CTX_DIM),
                                     jnp.float32)

    prompts_ref, feat_ref, ctx_shifted_ref = ref_forward(
        im_features, ctx, w1, b1, w2, b2, token_prefix, token_suffix)

    # --- default c_tile (single class tile at this toy scale) --------------
    prompts, image_features = cocoop_prompt_learner_forward(
        im_features, ctx, w1, b1, w2, b2, token_prefix, token_suffix)
    jax.block_until_ready(prompts)
    jax.block_until_ready(image_features)
    assert prompts.shape == (B, N_CLS, L_PREFIX + N_CTX + L_SUFFIX, CTX_DIM)
    assert image_features.shape == (B, CTX_DIM)
    assert jnp.allclose(prompts, prompts_ref, atol=1e-5, rtol=1e-5)
    assert jnp.allclose(image_features, feat_ref, atol=1e-5, rtol=1e-5)

    # --- forced non-divisor c_tile (exercises the masked partial last tile) -
    prompts2, feat2 = cocoop_prompt_learner_forward(
        im_features, ctx, w1, b1, w2, b2, token_prefix, token_suffix,
        c_tile=2)
    jax.block_until_ready(prompts2)
    assert jnp.allclose(prompts2, prompts_ref, atol=1e-5, rtol=1e-5)
    assert jnp.allclose(feat2, feat_ref, atol=1e-5, rtol=1e-5)

    # --- ctx_only path ------------------------------------------------------
    ctx_shifted, feat3 = cocoop_prompt_learner_forward(
        im_features, ctx, w1, b1, w2, b2, token_prefix, token_suffix,
        ctx_only=True)
    jax.block_until_ready(ctx_shifted)
    assert ctx_shifted.shape == (B, N_CTX, CTX_DIM)
    assert jnp.allclose(ctx_shifted, ctx_shifted_ref, atol=1e-5, rtol=1e-5)
    assert jnp.allclose(feat3, feat_ref, atol=1e-5, rtol=1e-5)

    print("KERNEL_OK")
</pallas_src>

<mosaic_0001>
module attributes {stable_mosaic.version = 11 : i64} {
  func.func @meta_net_kernel(%arg0: i32, %arg1: memref<1x4x128xf32, #tpu.memory_space<vmem>>, %arg2: memref<4x128xf32, #tpu.memory_space<vmem>>, %arg3: memref<128x8xf32, #tpu.memory_space<vmem>>, %arg4: memref<1x8xf32, #tpu.memory_space<vmem>>, %arg5: memref<8x128xf32, #tpu.memory_space<vmem>>, %arg6: memref<1x128xf32, #tpu.memory_space<vmem>>, %arg7: memref<1x4x128xf32, #tpu.memory_space<vmem>>, %arg8: memref<1x1x128xf32, #tpu.memory_space<vmem>>) attributes {dimension_semantics = [#tpu.dimension_semantics<parallel>], iteration_bounds = array<i64: 2>, scalar_prefetch = 0 : i64, scratch_operands = 0 : i64, tpu.core_type = #tpu.core_type<tc>, window_params = [{transform_indices = @transform_0, window_bounds = array<i64: 1, 4, 128>}, {pipeline_mode = #tpu.pipeline_mode<synchronous>, transform_indices = @transform_1, window_bounds = array<i64: 4, 128>}, {pipeline_mode = #tpu.pipeline_mode<synchronous>, transform_indices = @transform_2, window_bounds = array<i64: 128, 8>}, {pipeline_mode = #tpu.pipeline_mode<synchronous>, transform_indices = @transform_3, window_bounds = array<i64: 1, 8>}, {pipeline_mode = #tpu.pipeline_mode<synchronous>, transform_indices = @transform_4, window_bounds = array<i64: 8, 128>}, {pipeline_mode = #tpu.pipeline_mode<synchronous>, transform_indices = @transform_5, window_bounds = array<i64: 1, 128>}, {transform_indices = @transform_6, window_bounds = array<i64: 1, 4, 128>}, {transform_indices = @transform_7, window_bounds = array<i64: 1, 1, 128>}]} {
    %c0 = arith.constant 0 : index
    %c0_0 = arith.constant 0 : index
    %c0_1 = arith.constant 0 : index
    %0 = vector.load %arg1[%c0, %c0_0, %c0_1] : memref<1x4x128xf32, #tpu.memory_space<vmem>>, vector<1x4x128xf32>
    %1 = vector.shape_cast %0 : vector<1x4x128xf32> to vector<4x128xf32>
    %c0_2 = arith.constant 0 : index
    %c0_3 = arith.constant 0 : index
    %2 = vector.load %arg3[%c0_2, %c0_3] : memref<128x8xf32, #tpu.memory_space<vmem>>, vector<128x8xf32>
    %cst = arith.constant dense<0.000000e+00> : vector<4x8xf32>
    %3 = tpu.matmul %1, %2, %cst {dimension_numbers = #tpu.dot_dimension_numbers<[1], [0], [0], [1], [0, 0, 1, 1], [], []>} : vector<4x128xf32>, vector<128x8xf32>, vector<4x8xf32> -> vector<4x8xf32>
    %c0_4 = arith.constant 0 : index
    %c0_5 = arith.constant 0 : index
    %4 = vector.load %arg4[%c0_4, %c0_5] : memref<1x8xf32, #tpu.memory_space<vmem>>, vector<1x8xf32>
    %5 = vector.broadcast %4 : vector<1x8xf32> to vector<4x8xf32>
    %6 = arith.addf %3, %5 : vector<4x8xf32>
    %cst_6 = arith.constant 0.000000e+00 : f32
    %7 = vector.broadcast %cst_6 : f32 to vector<4x8xf32>
    %8 = arith.maximumf %6, %7 : vector<4x8xf32>
    %c0_7 = arith.constant 0 : index
    %c0_8 = arith.constant 0 : index
    %9 = vector.load %arg5[%c0_7, %c0_8] : memref<8x128xf32, #tpu.memory_space<vmem>>, vector<8x128xf32>
    %cst_9 = arith.constant dense<0.000000e+00> : vector<4x128xf32>
    %10 = tpu.matmul %8, %9, %cst_9 {dimension_numbers = #tpu.dot_dimension_numbers<[1], [0], [0], [1], [0, 0, 1, 1], [], []>} : vector<4x8xf32>, vector<8x128xf32>, vector<4x128xf32> -> vector<4x128xf32>
    %c0_10 = arith.constant 0 : index
    %c0_11 = arith.constant 0 : index
    %11 = vector.load %arg6[%c0_10, %c0_11] : memref<1x128xf32, #tpu.memory_space<vmem>>, vector<1x128xf32>
    %12 = vector.broadcast %11 : vector<1x128xf32> to vector<4x128xf32>
    %13 = arith.addf %10, %12 : vector<4x128xf32>
    %c0_12 = arith.constant 0 : index
    %c0_13 = arith.constant 0 : index
    %14 = vector.load %arg2[%c0_12, %c0_13] : memref<4x128xf32, #tpu.memory_space<vmem>>, vector<4x128xf32>
    %15 = arith.addf %14, %13 : vector<4x128xf32>
    %c0_14 = arith.constant 0 : index
    %c0_15 = arith.constant 0 : index
    %c0_16 = arith.constant 0 : index
    %16 = vector.load %arg7[%c0_14, %c0_15, %c0_16] : memref<1x4x128xf32, #tpu.memory_space<vmem>>, vector<1x4x128xf32>
    %17 = vector.shape_cast %16 : vector<1x4x128xf32> to vector<4x128xf32>
    %18 = vector.shape_cast %15 : vector<4x128xf32> to vector<1x4x128xf32>
    tpu.vector_store %arg7[%c0_14, %c0_15, %c0_16], %18 {strides = array<i32>} : memref<1x4x128xf32, #tpu.memory_space<vmem>>, vector<1x4x128xf32>,
    %19 = vector.extract_strided_slice %13 {offsets = [3, 0], sizes = [1, 128], strides = [1, 1]} : vector<4x128xf32> to vector<1x128xf32>
    %c0_17 = arith.constant 0 : index
    %c0_18 = arith.constant 0 : index
    %c0_19 = arith.constant 0 : index
    %20 = vector.load %arg8[%c0_17, %c0_18, %c0_19] : memref<1x1x128xf32, #tpu.memory_space<vmem>>, vector<1x1x128xf32>
    %21 = vector.shape_cast %20 : vector<1x1x128xf32> to vector<1x128xf32>
    %22 = vector.shape_cast %19 : vector<1x128xf32> to vector<1x1x128xf32>
    tpu.vector_store %arg8[%c0_17, %c0_18, %c0_19], %22 {strides = array<i32>} : memref<1x1x128xf32, #tpu.memory_space<vmem>>, vector<1x1x128xf32>,
    return
  }
  func.func @transform_0(%arg0: i32) -> (i32, i32, i32) {
    %c0_i32 = arith.constant 0 : i32
    %c0_i32_0 = arith.constant 0 : i32
    %c0_i32_1 = arith.constant 0 : i32
    return %arg0, %c0_i32, %c0_i32_0 : i32, i32, i32
  }
  func.func @transform_1(%arg0: i32) -> (i32, i32) {
    %c0_i32 = arith.constant 0 : i32
    %c0_i32_0 = arith.constant 0 : i32
    %c0_i32_1 = arith.constant 0 : i32
    return %c0_i32, %c0_i32_0 : i32, i32
  }
  func.func @transform_2(%arg0: i32) -> (i32, i32) {
    %c0_i32 = arith.constant 0 : i32
    %c0_i32_0 = arith.constant 0 : i32
    %c0_i32_1 = arith.constant 0 : i32
    return %c0_i32, %c0_i32_0 : i32, i32
  }
  func.func @transform_3(%arg0: i32) -> (i32, i32) {
    %c0_i32 = arith.constant 0 : i32
    %c0_i32_0 = arith.constant 0 : i32
    %c0_i32_1 = arith.constant 0 : i32
    return %c0_i32, %c0_i32_0 : i32, i32
  }
  func.func @transform_4(%arg0: i32) -> (i32, i32) {
    %c0_i32 = arith.constant 0 : i32
    %c0_i32_0 = arith.constant 0 : i32
    %c0_i32_1 = arith.constant 0 : i32
    return %c0_i32, %c0_i32_0 : i32, i32
  }
  func.func @transform_5(%arg0: i32) -> (i32, i32) {
    %c0_i32 = arith.constant 0 : i32
    %c0_i32_0 = arith.constant 0 : i32
    %c0_i32_1 = arith.constant 0 : i32
    return %c0_i32, %c0_i32_0 : i32, i32
  }
  func.func @transform_6(%arg0: i32) -> (i32, i32, i32) {
    %c0_i32 = arith.constant 0 : i32
    %c0_i32_0 = arith.constant 0 : i32
    %c0_i32_1 = arith.constant 0 : i32
    return %arg0, %c0_i32, %c0_i32_0 : i32, i32, i32
  }
  func.func @transform_7(%arg0: i32) -> (i32, i32, i32) {
    %c0_i32 = arith.constant 0 : i32
    %c0_i32_0 = arith.constant 0 : i32
    %c0_i32_1 = arith.constant 0 : i32
    return %arg0, %c0_i32, %c0_i32_0 : i32, i32, i32
  }
}

</mosaic_0001>

<llo_original>
// kernel: tpu_custom_call.1
$region0: #{tpu_custom_call.1}
  #allocation0 [shape = 'u32[]', space=smem, size = 0x4, offset = 0x4, fixed_abs, tag = 'smem constant byte address 0x4 - core index']
  #allocation1 [shape = 'u32[144,128]{1,0:T(1,128)}', space=vmem, size = 0x12000, scoped, tag = 'internal scratch']
  %s0 = inlined_call_operand.vmem [shape: f32[2,4,128], index: 0, kind: input, shape index: {}]
  %s1 = inlined_call_operand.vmem [shape: f32[4,128], index: 1, kind: input, shape index: {}]
  %s2 = inlined_call_operand.vmem [shape: f32[128,8], index: 2, kind: input, shape index: {}]
  %s3 = inlined_call_operand.vmem [shape: f32[1,8], index: 3, kind: input, shape index: {}]
  %s4 = inlined_call_operand.vmem [shape: f32[8,128], index: 4, kind: input, shape index: {}]
  %s5 = inlined_call_operand.vmem [shape: f32[1,128], index: 5, kind: input, shape index: {}]
  %s6 = inlined_call_operand.hbm [shape: f32[2,4,128], index: 6, kind: output, shape index: {0}]
  %s7 = inlined_call_operand.hbm [shape: f32[2,1,128], index: 7, kind: output, shape index: {1}]
  %8 = xla_tuple %s6, %s7
  %s9 = sld [smem:[#allocation0]]
  $region65: #{tpu_custom_call.1} parent=0
    _
  %s11 = ssub.s32 1, %s9
  %s12 = scalar_select 0, %s11, %s9
  $region1: #{tpu_custom_call.1} parent=0
    #allocation2 [shape = 'u8[4096]{0}', space=vmem, size = 0x1000, scoped, tag = 'output window, operand 0']
    #allocation3 [shape = 's32[2]{0}', space=sflag, size = 0x8, scoped, tag = 'scoped memory for tpu_custom_call.1']
    #allocation4 [shape = 'u8[1024]{0}', space=vmem, size = 0x400, scoped, tag = 'output window, operand 1']
    #allocation5 [shape = 's32[2]{0}', space=sflag, size = 0x8, scoped, tag = 'scoped memory for tpu_custom_call.1']
    %13 = vsyncpa [#allocation3], 0
    %s14 = scalar_lea.sflag [#allocation3], 1
    %15 = vsyncpa %s14, 0
    %16 = vsyncpa [#allocation5], 0
    %s17 = scalar_lea.sflag [#allocation5], 1
    %18 = vsyncpa %s17, 0
    loop: start=0, step=1, limit=4
    $region2: #{tpu_custom_call.1} parent=1 // loop_pre_header
      _
    $region3: #{tpu_custom_call.1} parent=1 // loop_header
      %s20 = sphi 0, %s24
      %p21 = scmp.ge.s32.totalorder %s20, 4
      %s30 = sphi 0, %s32
      %s33 = sphi 0, %s30
      %s34 = sphi 0, %s33
      %s50 = sphi 0, %s34
      %s54 = sphi 0, %s54
      %s56 = sphi 0, %s54
      %s57 = sphi 0, %s56
      %s71 = sphi 0, %s57
      %s75 = sphi 0, %s75
      %s77 = sphi 0, %s75
      %s78 = sphi 0, %s77
      %s92 = sphi 0, %s78
      %s96 = sphi 0, %s96
      %s98 = sphi 0, %s96
      %s99 = sphi 0, %s98
      %s113 = sphi 0, %s99
      %s117 = sphi 0, %s117
      %s119 = sphi 0, %s117
      %s120 = sphi 0, %s119
      %s134 = sphi 0, %s120
      %s138 = sphi 0, %s138
      %s140 = sphi 0, %s138
      %s141 = sphi 0, %s140
      %s155 = sphi 0, %s141
      %s161 = sphi 0, %s163
      %s164 = sphi 0, %s161
      %s165 = sphi 0, %s164
      %s181 = sphi 0, %s165
      %s187 = sphi 0, %s189
      %s190 = sphi 0, %s187
      %s191 = sphi 0, %s190
      %s207 = sphi 0, %s191
    $region4: #{tpu_custom_call.1} parent=1 // loop_header_branch
      %23 = sbr.rel (%p21) target = $region8
    $region5: #{tpu_custom_call.1} parent=1 // loop_body
      %s25 = ssub.s32 %s20, 1
      %s26 = ssub.s32 %s20, 2
      %s27 = sadd.s32 %s20, 1
      %s28 = ssub.s32 %s20, %s27
      %p29 = scmp.eq.s32.totalorder %s28, 0
      %s31 = sadd.s32 %s30, 1
      %s32 = scalar_select %p29, %s30, %s31
      %p35 = pneg %p29
      %p36 = scmp.eq.s32.totalorder %s20, 1
      %p37 = por %p35, %p36
      %p38 = scmp.ne.s32.totalorder %s30, %s33
      %p39 = scmp.eq.s32.totalorder %s20, 0
      %p40 = por %p38, %p39
      %p41 = scmp.ne.s32.totalorder %s30, %s33
      %p42 = scmp.eq.s32.totalorder %s25, 1
      %p43 = por %p41, %p42
      %p44 = scmp.ne.s32.totalorder %s33, %s34
      %p45 = scmp.eq.s32.totalorder %s25, 0
      %p46 = por %p44, %p45
      %p47 = scmp.ne.s32.totalorder %s33, %s34
      %p48 = scmp.eq.s32.totalorder %s26, 1
      %p49 = por %p47, %p48
      %p51 = scmp.ne.s32.totalorder %s34, %s50
      %p52 = scmp.eq.s32.totalorder %s26, 0
      %p53 = por %p51, %p52
      %s55 = sadd.s32 %s54, 1
      %p58 = scmp.eq.s32.totalorder %s20, 1
      %p59 = scmp.ne.s32.totalorder %s54, %s56
      %p60 = scmp.eq.s32.totalorder %s20, 0
      %p61 = por %p59, %p60
      %p62 = scmp.ne.s32.totalorder %s54, %s56
      %p63 = scmp.eq.s32.totalorder %s25, 1
      %p64 = por %p62, %p63
      %p65 = scmp.ne.s32.totalorder %s56, %s57
      %p66 = scmp.eq.s32.totalorder %s25, 0
      %p67 = por %p65, %p66
      %p68 = scmp.ne.s32.totalorder %s56, %s57
      %p69 = scmp.eq.s32.totalorder %s26, 1
      %p70 = por %p68, %p69
      %p72 = scmp.ne.s32.totalorder %s57, %s71
      %p73 = scmp.eq.s32.totalorder %s26, 0
      %p74 = por %p72, %p73
      %s76 = sadd.s32 %s75, 1
      %p79 = scmp.eq.s32.totalorder %s20, 1
      %p80 = scmp.ne.s32.totalorder %s75, %s77
      %p81 = scmp.eq.s32.totalorder %s20, 0
      %p82 = por %p80, %p81
      %p83 = scmp.ne.s32.totalorder %s75, %s77
      %p84 = scmp.eq.s32.totalorder %s25, 1
      %p85 = por %p83, %p84
      %p86 = scmp.ne.s32.totalorder %s77, %s78
      %p87 = scmp.eq.s32.totalorder %s25, 0
      %p88 = por %p86, %p87
      %p89 = scmp.ne.s32.totalorder %s77, %s78
      %p90 = scmp.eq.s32.totalorder %s26, 1
      %p91 = por %p89, %p90
      %p93 = scmp.ne.s32.totalorder %s78, %s92
      %p94 = scmp.eq.s32.totalorder %s26, 0
      %p95 = por %p93, %p94
      %s97 = sadd.s32 %s96, 1
      %p100 = scmp.eq.s32.totalorder %s20, 1
      %p101 = scmp.ne.s32.totalorder %s96, %s98
      %p102 = scmp.eq.s32.totalorder %s20, 0
      %p103 = por %p101, %p102
      %p104 = scmp.ne.s32.totalorder %s96, %s98
      %p105 = scmp.eq.s32.totalorder %s25, 1
      %p106 = por %p104, %p105
      %p107 = scmp.ne.s32.totalorder %s98, %s99
      %p108 = scmp.eq.s32.totalorder %s25, 0
      %p109 = por %p107, %p108
      %p110 = scmp.ne.s32.totalorder %s98, %s99
      %p111 = scmp.eq.s32.totalorder %s26, 1
      %p112 = por %p110, %p111
      %p114 = scmp.ne.s32.totalorder %s99, %s113
      %p115 = scmp.eq.s32.totalorder %s26, 0
      %p116 = por %p114, %p115
      %s118 = sadd.s32 %s117, 1
      %p121 = scmp.eq.s32.totalorder %s20, 1
      %p122 = scmp.ne.s32.totalorder %s117, %s119
      %p123 = scmp.eq.s32.totalorder %s20, 0
      %p124 = por %p122, %p123
      %p125 = scmp.ne.s32.totalorder %s117, %s119
      %p126 = scmp.eq.s32.totalorder %s25, 1
      %p127 = por %p125, %p126
      %p128 = scmp.ne.s32.totalorder %s119, %s120
      %p129 = scmp.eq.s32.totalorder %s25, 0
      %p130 = por %p128, %p129
      %p131 = scmp.ne.s32.totalorder %s119, %s120
      %p132 = scmp.eq.s32.totalorder %s26, 1
      %p133 = por %p131, %p132
      %p135 = scmp.ne.s32.totalorder %s120, %s134
      %p136 = scmp.eq.s32.totalorder %s26, 0
      %p137 = por %p135, %p136
      %s139 = sadd.s32 %s138, 1
      %p142 = scmp.eq.s32.totalorder %s20, 1
      %p143 = scmp.ne.s32.totalorder %s138, %s140
      %p144 = scmp.eq.s32.totalorder %s20, 0
      %p145 = por %p143, %p144
      %p146 = scmp.ne.s32.totalorder %s138, %s140
      %p147 = scmp.eq.s32.totalorder %s25, 1
      %p148 = por %p146, %p147
      %p149 = scmp.ne.s32.totalorder %s140, %s141
      %p150 = scmp.eq.s32.totalorder %s25, 0
      %p151 = por %p149, %p150
      %p152 = scmp.ne.s32.totalorder %s140, %s141
      %p153 = scmp.eq.s32.totalorder %s26, 1
      %p154 = por %p152, %p153
      %p156 = scmp.ne.s32.totalorder %s141, %s155
      %p157 = scmp.eq.s32.totalorder %s26, 0
      %p158 = por %p156, %p157
      %s159 = ssub.s32 %s20, %s27
      %p160 = scmp.eq.s32.totalorder %s159, 0
      %s162 = sadd.s32 %s161, 1
      %s163 = scalar_select %p160, %s161, %s162
      %p166 = pneg %p160
      %p167 = scmp.eq.s32.totalorder %s20, 1
      %p168 = por %p166, %p167
      %p169 = scmp.ne.s32.totalorder %s161, %s164
      %p170 = scmp.eq.s32.totalorder %s20, 0
      %p171 = por %p169, %p170
      %p172 = scmp.ne.s32.totalorder %s161, %s164
      %p173 = scmp.eq.s32.totalorder %s25, 1
      %p174 = por %p172, %p173
      %p175 = scmp.ne.s32.totalorder %s164, %s165
      %p176 = scmp.eq.s32.totalorder %s25, 0
      %p177 = por %p175, %p176
      %p178 = scmp.ne.s32.totalorder %s164, %s165
      %p179 = scmp.eq.s32.totalorder %s26, 1
      %p180 = por %p178, %p179
      %p182 = scmp.ne.s32.totalorder %s165, %s181
      %p183 = scmp.eq.s32.totalorder %s26, 0
      %p184 = por %p182, %p183
      %s185 = ssub.s32 %s20, %s27
      %p186 = scmp.eq.s32.totalorder %s185, 0
      %s188 = sadd.s32 %s187, 1
      %s189 = scalar_select %p186, %s187, %s188
      %p192 = pneg %p186
      %p193 = scmp.eq.s32.totalorder %s20, 1
      %p194 = por %p192, %p193
      %p195 = scmp.ne.s32.totalorder %s187, %s190
      %p196 = scmp.eq.s32.totalorder %s20, 0
      %p197 = por %p195, %p196
      %p198 = scmp.ne.s32.totalorder %s187, %s190
      %p199 = scmp.eq.s32.totalorder %s25, 1
      %p200 = por %p198, %p199
      %p201 = scmp.ne.s32.totalorder %s190, %s191
      %p202 = scmp.eq.s32.totalorder %s25, 0
      %p203 = por %p201, %p202
      %p204 = scmp.ne.s32.totalorder %s190, %s191
      %p205 = scmp.eq.s32.totalorder %s26, 1
      %p206 = por %p204, %p205
      %p208 = scmp.ne.s32.totalorder %s191, %s207
      %p209 = scmp.eq.s32.totalorder %s26, 0
      %p210 = por %p208, %p209
      %p211 = scmp.le.s32.totalorder 1, %s20
      %p212 = scmp.lt.s32.totalorder %s20, 3
      %p213 = pnand %p211, %p212
      %p214 = pneg %p213
      // Predicated region
      $region9: #{tpu_custom_call.1} parent=5 // pred_check
        _
      $region10: #{tpu_custom_call.1} parent=5 // pred_check_branch
        %216 = sbr.rel (%p213) target = $region12
      $region11: #{tpu_custom_call.1} parent=5 // pred_region
        %s217 = ssub.s32 %s20, 1
        // Predicated region
        $region13: #{tpu_custom_call.1} parent=11 // pred_check
          %p218 = pneg %p67
        $region14: #{tpu_custom_call.1} parent=11 // pred_check_branch
          %220 = sbr.rel (%p218) target = $region16
        $region15: #{tpu_custom_call.1} parent=11 // pred_region
          _
        $region16: #{tpu_custom_call.1} parent=11 // pred_fallthru
          _
        // Predicated region
        $region17: #{tpu_custom_call.1} parent=11 // pred_check
          %p221 = pneg %p88
        $region18: #{tpu_custom_call.1} parent=11 // pred_check_branch
          %223 = sbr.rel (%p221) target = $region20
        $region19: #{tpu_custom_call.1} parent=11 // pred_region
          _
        $region20: #{tpu_custom_call.1} parent=11 // pred_fallthru
          _
        // Predicated region
        $region21: #{tpu_custom_call.1} parent=11 // pred_check
          %p224 = pneg %p109
        $region22: #{tpu_custom_call.1} parent=11 // pred_check_branch
          %226 = sbr.rel (%p224) target = $region24
        $region23: #{tpu_custom_call.1} parent=11 // pred_region
          _
        $region24: #{tpu_custom_call.1} parent=11 // pred_fallthru
          _
        // Predicated region
        $region25: #{tpu_custom_call.1} parent=11 // pred_check
          %p227 = pneg %p130
        $region26: #{tpu_custom_call.1} parent=11 // pred_check_branch
          %229 = sbr.rel (%p227) target = $region28
        $region27: #{tpu_custom_call.1} parent=11 // pred_region
          _
        $region28: #{tpu_custom_call.1} parent=11 // pred_fallthru
          _
        // Predicated region
        $region29: #{tpu_custom_call.1} parent=11 // pred_check
          %p230 = pneg %p151
        $region30: #{tpu_custom_call.1} parent=11 // pred_check_branch
          %232 = sbr.rel (%p230) target = $region32
        $region31: #{tpu_custom_call.1} parent=11 // pred_region
          _
        $region32: #{tpu_custom_call.1} parent=11 // pred_fallthru
          _
      $region12: #{tpu_custom_call.1} parent=5 // pred_fallthru
        _
      %p233 = scmp.lt.s32.totalorder %s20, 2
      // Predicated region
      $region33: #{tpu_custom_call.1} parent=5 // pred_check
        %p234 = pneg %p233
      $region34: #{tpu_custom_call.1} parent=5 // pred_check_branch
        %236 = sbr.rel (%p234) target = $region36
      $region35: #{tpu_custom_call.1} parent=5 // pred_region
        // Predicated region
        $region37: #{tpu_custom_call.1} parent=35 // pred_check
          %p237 = pneg %p40
        $region38: #{tpu_custom_call.1} parent=35 // pred_check_branch
          %239 = sbr.rel (%p237) target = $region40
        $region39: #{tpu_custom_call.1} parent=35 // pred_region
          %p240 = scmp.lt.s32.totalorder %s20, 1
          %s241 = scalar_select %p240, %s20, 1
          %s242 = smul.addr %s241, 4
          %s243 = scalar_lea.vmem %s0, %s242
        $region40: #{tpu_custom_call.1} parent=35 // pred_fallthru
          _
      $region36: #{tpu_custom_call.1} parent=5 // pred_fallthru
        _
      %p244 = scmp.le.s32.totalorder 1, %s20
      %p245 = scmp.lt.s32.totalorder %s20, 3
      %p246 = pnand %p244, %p245
      %p247 = pneg %p246
      // Predicated region
      $region41: #{tpu_custom_call.1} parent=5 // pred_check
        _
      $region42: #{tpu_custom_call.1} parent=5 // pred_check_branch
        %249 = sbr.rel (%p246) target = $region44
      $region43: #{tpu_custom_call.1} parent=5 // pred_region
        %s250 = ssub.s32 %s20, 1
        %p251 = scmp.lt.s32.totalorder %s25, 1
        %s252 = scalar_select %p251, %s25, 1
        %s253 = smul.addr %s252, 4
        %s254 = scalar_lea.vmem %s0, %s253
        %p255 = pneg %p46
        %p256 = pneg %p43
        %p257 = pneg %p67
        %p258 = pneg %p64
        %p259 = pneg %p88
        %p260 = pneg %p85
        %p261 = pneg %p109
        %p262 = pneg %p106
        %p263 = pneg %p130
        %p264 = pneg %p127
        %p265 = pneg %p151
        %p266 = pneg %p148
        %p267 = pneg %p177
        %p268 = pneg %p174
        %s269 = sand.u32 %s164, 1
        %s270 = scalar_lea.sflag [#allocation3], %s269
        %s271 = sand.u32 %s164, 1
        %s272 = smul.addr %s271, 4
        %s273 = scalar_lea.vmem [#allocation2], %s272
        %p274 = pneg %p203
        %p275 = pneg %p200
        %s276 = sand.u32 %s190, 1
        %s277 = scalar_lea.sflag [#allocation5], %s276
        %s278 = sand.u32 %s190, 1
        %s279 = scalar_lea.vmem [#allocation4], %s278
        %p280 = scmp.lt.s32.totalorder %s25, 1
        %s281 = scalar_select %p280, %s25, 1
        %s282 = smul.addr %s281, 4
        %s283 = scalar_lea.vmem %s0, %s282
        %v284 = vld [vmem:[%s283] sm:$0xf]
        %v285 = vld [vmem:[%s2] sm:$0xff]
        %v286 = vld [vmem:[%s2 + $0x8] sm:$0xff]
        %v287 = vld [vmem:[%s2 + $0x10] sm:$0xff]
        %v288 = vld [vmem:[%s2 + $0x18] sm:$0xff]
        %v289 = vld [vmem:[%s2 + $0x20] sm:$0xff]
        %v290 = vld [vmem:[%s2 + $0x28] sm:$0xff]
        %v291 = vld [vmem:[%s2 + $0x30] sm:$0xff]
        %v292 = vld [vmem:[%s2 + $0x38] sm:$0xff]
        %v293 = vld [vmem:[%s2 + $0x40] sm:$0xff]
        %v294 = vld [vmem:[%s2 + $0x48] sm:$0xff]
        %v295 = vld [vmem:[%s2 + $0x50] sm:$0xff]
        %v296 = vld [vmem:[%s2 + $0x58] sm:$0xff]
        %v297 = vld [vmem:[%s2 + $0x60] sm:$0xff]
        %v298 = vld [vmem:[%s2 + $0x68] sm:$0xff]
        %v299 = vld [vmem:[%s2 + $0x70] sm:$0xff]
        %v300 = vld [vmem:[%s2 + $0x78] sm:$0xff]
        %v301 = vld [vmem:[%s3] sm:$0x1]
        %v303 = vlaneseq
        %v304 = vshrl.u32 %v303, 7
        %v305 = vsub.s32 0, %v304
        %v306 = vrot.slane %v301, %v305
        %308 = vmatprep.subr.mxu0 0.0
        %309 = vmatpush1.msra.mxu0 %v285
        %310 = vmatprep.subr.mxu0 0.0
        %311 = vmatpush1.msra.mxu0 %v286
        %312 = vmatprep.subr.mxu0 0.0
        %313 = vmatpush1.msra.mxu0 %v287
        %314 = vmatprep.subr.mxu0 0.0
        %315 = vmatpush1.msra.mxu0 %v288
        %316 = vmatprep.subr.mxu0 0.0
        %317 = vmatpush1.msra.mxu0 %v289
        %318 = vmatprep.subr.mxu0 0.0
        %319 = vmatpush1.msra.mxu0 %v290
        %320 = vmatprep.subr.mxu0 0.0
        %321 = vmatpush1.msra.mxu0 %v291
        %322 = vmatprep.subr.mxu0 0.0
        %323 = vmatpush1.msra.mxu0 %v292
        %324 = vmatprep.subr.mxu0 0.0
        %325 = vmatpush1.msra.mxu0 %v293
        %326 = vmatprep.subr.mxu0 0.0
        %327 = vmatpush1.msra.mxu0 %v294
        %328 = vmatprep.subr.mxu0 0.0
        %329 = vmatpush1.msra.mxu0 %v295
        %330 = vmatprep.subr.mxu0 0.0
        %331 = vmatpush1.msra.mxu0 %v296
        %332 = vmatprep.subr.mxu0 0.0
        %333 = vmatpush1.msra.mxu0 %v297
        %334 = vmatprep.subr.mxu0 0.0
        %335 = vmatpush1.msra.mxu0 %v298
        %336 = vmatprep.subr.mxu0 0.0
        %337 = vmatpush1.msra.mxu0 %v299
        %338 = vmatprep.subr.mxu0 0.0
        %339 = vmatpush1.msra.mxu0 %v300
        %340 = vmatprep.subr.mxu0 0.0
        %341 = vmatpush1.msra.mxu0 0.0
        %342 = vmatprep.subr.mxu0 0.0
        %343 = vmatpush1.msra.mxu0 0.0
        %344 = vmatprep.subr.mxu0 0.0
        %345 = vmatpush1.msra.mxu0 0.0
        %346 = vmatprep.subr.mxu0 0.0
        %347 = vmatpush1.msra.mxu0 0.0
        %348 = vmatprep.subr.mxu0 0.0
        %349 = vmatpush1.msra.mxu0 0.0
        %350 = vmatprep.subr.mxu0 0.0
        %351 = vmatpush1.msra.mxu0 0.0
        %352 = vmatprep.subr.mxu0 0.0
        %353 = vmatpush1.msra.mxu0 0.0
        %354 = vmatprep.subr.mxu0 0.0
        %355 = vmatpush1.msra.mxu0 0.0
        %356 = vmatprep.subr.mxu0 0.0
        %357 = vmatpush1.msra.mxu0 0.0
        %358 = vmatprep.subr.mxu0 0.0
        %359 = vmatpush1.msra.mxu0 0.0
        %360 = vmatprep.subr.mxu0 0.0
        %361 = vmatpush1.msra.mxu0 0.0
        %362 = vmatprep.subr.mxu0 0.0
        %363 = vmatpush1.msra.mxu0 0.0
        %364 = vmatprep.subr.mxu0 0.0
        %365 = vmatpush1.msra.mxu0 0.0
        %366 = vmatprep.subr.mxu0 0.0
        %367 = vmatpush1.msra.mxu0 0.0
        %368 = vmatprep.subr.mxu0 0.0
        %369 = vmatpush1.msra.mxu0 0.0
        %370 = vmatprep.subr.mxu0 0.0
        %371 = vmatpush1.msra.mxu0 0.0
        %372 = vmatprep.mubr.f32.mxu0 0.0
        %373 = vmatmul.mubr.f32.gmra.mrb[0].mxu0 %v284
        %v374 = vpop.f32.mrb[0].mxu0
        %v375 = vadd.f32 %v306, %v374
        %v376 = vpop.f32.mrb[0].mxu0
        %377 = vdwg.mxu0
        %v378 = vmax.f32 %v375, 0.0
        %v379 = vld [vmem:[%s4] sm:$0xff]
        %v380 = vld [vmem:[%s5] sm:$0x1]
        %v382 = vlaneseq
        %v383 = vshrl.u32 %v382, 7
        %v384 = vsub.s32 0, %v383
        %v385 = vrot.slane %v380, %v384
        %vm387 = vcmask 64512
        %v389 = vsel %vm387, %v378, 0
        %391 = vmatprep.subr.mxu0 0.0
        %392 = vmatpush1.msra.mxu0 %v379
        %393 = vmatprep.subr.mxu0 0.0
        %394 = vmatpush1.msra.mxu0 0.0
        %395 = vmatprep.subr.mxu0 0.0
        %396 = vmatpush1.msra.mxu0 0.0
        %397 = vmatprep.subr.mxu0 0.0
        %398 = vmatpush1.msra.mxu0 0.0
        %399 = vmatprep.subr.mxu0 0.0
        %400 = vmatpush1.msra.mxu0 0.0
        %401 = vmatprep.subr.mxu0 0.0
        %402 = vmatpush1.msra.mxu0 0.0
        %403 = vmatprep.subr.mxu0 0.0
        %404 = vmatpush1.msra.mxu0 0.0
        %405 = vmatprep.subr.mxu0 0.0
        %406 = vmatpush1.msra.mxu0 0.0
        %407 = vmatprep.subr.mxu0 0.0
        %408 = vmatpush1.msra.mxu0 0.0
        %409 = vmatprep.subr.mxu0 0.0
        %410 = vmatpush1.msra.mxu0 0.0
        %411 = vmatprep.subr.mxu0 0.0
        %412 = vmatpush1.msra.mxu0 0.0
        %413 = vmatprep.subr.mxu0 0.0
        %414 = vmatpush1.msra.mxu0 0.0
        %415 = vmatprep.subr.mxu0 0.0
        %416 = vmatpush1.msra.mxu0 0.0
        %417 = vmatprep.subr.mxu0 0.0
        %418 = vmatpush1.msra.mxu0 0.0
        %419 = vmatprep.subr.mxu0 0.0
        %420 = vmatpush1.msra.mxu0 0.0
        %421 = vmatprep.subr.mxu0 0.0
        %422 = vmatpush1.msra.mxu0 0.0
        %423 = vmatprep.subr.mxu0 0.0
        %424 = vmatpush1.msra.mxu0 0.0
        %425 = vmatprep.subr.mxu0 0.0
        %426 = vmatpush1.msra.mxu0 0.0
        %427 = vmatprep.subr.mxu0 0.0
        %428 = vmatpush1.msra.mxu0 0.0
        %429 = vmatprep.subr.mxu0 0.0
        %430 = vmatpush1.msra.mxu0 0.0
        %431 = vmatprep.subr.mxu0 0.0
        %432 = vmatpush1.msra.mxu0 0.0
        %433 = vmatprep.subr.mxu0 0.0
        %434 = vmatpush1.msra.mxu0 0.0
        %435 = vmatprep.subr.mxu0 0.0
        %436 = vmatpush1.msra.mxu0 0.0
        %437 = vmatprep.subr.mxu0 0.0
        %438 = vmatpush1.msra.mxu0 0.0
        %439 = vmatprep.subr.mxu0 0.0
        %440 = vmatpush1.msra.mxu0 0.0
        %441 = vmatprep.subr.mxu0 0.0
        %442 = vmatpush1.msra.mxu0 0.0
        %443 = vmatprep.subr.mxu0 0.0
        %444 = vmatpush1.msra.mxu0 0.0
        %445 = vmatprep.subr.mxu0 0.0
        %446 = vmatpush1.msra.mxu0 0.0
        %447 = vmatprep.subr.mxu0 0.0
        %448 = vmatpush1.msra.mxu0 0.0
        %449 = vmatprep.subr.mxu0 0.0
        %450 = vmatpush1.msra.mxu0 0.0
        %451 = vmatprep.subr.mxu0 0.0
        %452 = vmatpush1.msra.mxu0 0.0
        %453 = vmatprep.subr.mxu0 0.0
        %454 = vmatpush1.msra.mxu0 0.0
        %455 = vmatprep.mubr.f32.mxu0 0.0
        %456 = vmatmul.mubr.f32.gmra.mrb[0].mxu0 %v389
        %v457 = vpop.f32.mrb[0].mxu0
        %v458 = vadd.f32 %v385, %v457
        %v459 = vpop.f32.mrb[0].mxu0
        %460 = vdwg.mxu0
        %v461 = vld [vmem:[%s1] sm:$0xf]
        %v462 = vadd.f32 %v461, %v458
        %463 = vst [vmem:[%s273] sm:$0xf] %v462
        %464 = vst [vmem:[%s279 - $0x3] sm:$0x8] %v458
        %s465 = sand.u32 %s164, 1
        %s466 = scalar_lea.sflag [#allocation3], %s465
        %s467 = sand.u32 %s164, 1
        %s468 = smul.addr %s467, 4
        %s469 = scalar_lea.vmem [#allocation2], %s468
        %s470 = sand.u32 %s190, 1
        %s471 = scalar_lea.sflag [#allocation5], %s470
        %s472 = sand.u32 %s190, 1
        %s473 = scalar_lea.vmem [#allocation4], %s472
        // Predicated region
        $region45: #{tpu_custom_call.1} parent=43 // pred_check
          %p474 = pneg %p174
        $region46: #{tpu_custom_call.1} parent=43 // pred_check_branch
          %476 = sbr.rel (%p474) target = $region48
        $region47: #{tpu_custom_call.1} parent=43 // pred_region
          %s478 = ssub.s32 64, 64
          %479 = vsyncadd %s466, %s478
          %s480 = smul.addr %s25, 64
          %s481 = scalar_lea.hbm %s6, %s480
          %s483 = sshll.u32 %s469, 4
          %s484 = int_to_ptr.vmem [resolvable:$true] %s483
          %486 = dma.vmem_to_hbm [thread:$0]  %s484, 64, %s481, %s466
        $region48: #{tpu_custom_call.1} parent=43 // pred_fallthru
          _
        // Predicated region
        $region49: #{tpu_custom_call.1} parent=43 // pred_check
          %p487 = pneg %p200
        $region50: #{tpu_custom_call.1} parent=43 // pred_check_branch
          %489 = sbr.rel (%p487) target = $region52
        $region51: #{tpu_custom_call.1} parent=43 // pred_region
          %s491 = ssub.s32 16, 16
          %492 = vsyncadd %s471, %s491
          %s493 = smul.addr %s25, 16
          %s494 = scalar_lea.hbm %s7, %s493
          %s496 = sshll.u32 %s473, 4
          %s497 = int_to_ptr.vmem [resolvable:$true] %s496
          %499 = dma.vmem_to_hbm [thread:$0]  %s497, 16, %s494, %s471
        $region52: #{tpu_custom_call.1} parent=43 // pred_fallthru
          _
      $region44: #{tpu_custom_call.1} parent=5 // pred_fallthru
        _
      %p500 = scmp.le.s32.totalorder 2, %s20
      // Predicated region
      $region53: #{tpu_custom_call.1} parent=5 // pred_check
        %p501 = pneg %p500
      $region54: #{tpu_custom_call.1} parent=5 // pred_check_branch
        %503 = sbr.rel (%p501) target = $region56
      $region55: #{tpu_custom_call.1} parent=5 // pred_region
        %s504 = ssub.s32 %s20, 2
        // Predicated region
        $region57: #{tpu_custom_call.1} parent=55 // pred_check
          %p505 = pneg %p180
        $region58: #{tpu_custom_call.1} parent=55 // pred_check_branch
          %507 = sbr.rel (%p505) target = $region60
        $region59: #{tpu_custom_call.1} parent=55 // pred_region
          %s508 = sand.u32 %s165, 1
          %s509 = scalar_lea.sflag [#allocation3], %s508
          %s510 = sand.u32 %s165, 1
          %s511 = smul.addr %s510, 4
          %s512 = scalar_lea.vmem [#allocation2], %s511
          %513 = dma.done %s509, 64
        $region60: #{tpu_custom_call.1} parent=55 // pred_fallthru
          _
        // Predicated region
        $region61: #{tpu_custom_call.1} parent=55 // pred_check
          %p514 = pneg %p206
        $region62: #{tpu_custom_call.1} parent=55 // pred_check_branch
          %516 = sbr.rel (%p514) target = $region64
        $region63: #{tpu_custom_call.1} parent=55 // pred_region
          %s517 = sand.u32 %s191, 1
          %s518 = scalar_lea.sflag [#allocation5], %s517
          %s519 = sand.u32 %s191, 1
          %s520 = scalar_lea.vmem [#allocation4], %s519
          %521 = dma.done %s518, 16
        $region64: #{tpu_custom_call.1} parent=55 // pred_fallthru
          _
      $region56: #{tpu_custom_call.1} parent=5 // pred_fallthru
        _
    $region6: #{tpu_custom_call.1} parent=1 // loop_footer
      %s24 = sadd.s32 1, %s20
    $region7: #{tpu_custom_call.1} parent=1 // loop_footer_branch
      %19 = sbr.rel target = $region3
    $region8: #{tpu_custom_call.1} parent=1 // loop_exit
      _
    %522 = vsyncpa [#allocation3], 1
    %s523 = scalar_lea.sflag [#allocation3], 1
    %524 = vsyncpa %s523, 1
    %525 = vsyncpa [#allocation5], 1
    %s526 = scalar_lea.sflag [#allocation5], 1
    %527 = vsyncpa %s526, 1

</llo_original>
